<compile_context>
chip_gen: v7x
topology: tpu7x:2x2x1
jax: 0.10.0
libtpu: 0.0.40
codegen_flags: <defaults>
</compile_context>

<pallas_src>
import functools

import jax
import jax.numpy as jnp
from jax import lax
from jax.experimental import pallas as pl
from jax.experimental.pallas import tpu as pltpu

# ----- module hyper-parameters -------------------------------------------------
C1 = 4
EXP1, EXP2 = 2, 2
K = 3
S = 2
CH = C1 * EXP1          # 8   (after conv1)
C2 = C1 * EXP1 * EXP2   # 16  (after conv2)
PAD = K // 2
EPS = 1e-5


def _dssc_kernel(x_ref, s1_ref, w1v_ref, m2_ref, bias_ref, o_ref, *, rows):
    # x_ref:    (1, TB*H, CH*W)   TB images stacked on the sublane axis,
    #                             conv1-output channels stacked on lanes
    # s1_ref:   (K*TB*Ho, TB*H)   block-diag binary per-tap row selection
    #                             (encodes stride-2 + padding + batch blocks)
    # w1v_ref:  (K, CH*W)         per-tap per-lane conv1 weights (scale1 folded)
    # m2_ref:   (CH*W, C2*Wo)     block-diagonal conv2 matrix (scale2 folded)
    # bias_ref: (1, C2*Wo)        bias1-through-conv2 + bias2 per (channel, wo)
    # o_ref:    (1, TB*Ho, C2*Wo)
    # rows = TB*Ho
    xh = x_ref[0]                                                   # (TB*H, CH*W)

    # ---- phase 1: depthwise conv along H (stride S) + BN1 scale,
    #      all TB images gathered by a single MXU dot ----
    taps = jnp.dot(s1_ref[...], xh,
                   preferred_element_type=jnp.float32)              # (K*TB*Ho, CH*W)
    mid = w1v_ref[0:1, :] * taps[0:rows, :]
    for t in range(1, K):                                           # static unroll, K=3
        mid = mid + w1v_ref[t:t + 1, :] * taps[t * rows:(t + 1) * rows, :]
    # mid: (TB*Ho, CH*W), kept in vregs (no VMEM scratch)

    # ---- phase 2: depthwise conv along W (stride S) + BN2 + bias,
    #      one lane-dense dot, one full-block unmasked store ----
    out = jnp.dot(mid, m2_ref[...],
                  preferred_element_type=jnp.float32) + bias_ref[...]
    o_ref[0] = out.astype(o_ref.dtype)                              # (TB*Ho, C2*Wo)


@jax.jit
def depth_spatial_sep_conv(x, w1, scale1, bias1, w2, scale2, bias2):
    """x: (N, C1, H, W) f32.  w1: (CH, K) taps along H, w2: (C2, K) taps along W.
    scale*/bias*: eval-mode BatchNorm folded to per-channel scale & bias."""
    N, _, H, W = x.shape
    Ho = (H + 2 * PAD - K) // S + 1
    Wo = (W + 2 * PAD - K) // S + 1
    f32 = jnp.float32

    # Images per grid step (largest divisor of N that is <= 8).
    TB = 1
    for cand in (8, 4, 2):
        if N % cand == 0:
            TB = cand
            break
    NB = N // TB
    rows = TB * Ho

    # --- wrapper-side layout plumbing + constant folding (runs once) ----------
    # Expand input channels C1 -> CH (grouped conv multiplier), put (channel, w)
    # on the lane axis and stack TB images along the sublane axis:
    # (NB, TB*H, CH*W).
    xe = jnp.repeat(x, EXP1, axis=1)                                # (N, CH, H, W)
    xe = jnp.transpose(xe, (0, 2, 1, 3)).reshape(N, H, CH * W)
    xe = xe.reshape(NB, TB * H, CH * W)

    # Block-diagonal per-tap row-selection matrix for the H conv
    # (encodes stride + pad + per-image sublane blocks).  Row = (t, b, ho).
    t_a = jnp.arange(K)[:, None, None, None, None]
    b_a = jnp.arange(TB)[None, :, None, None, None]
    ho_a = jnp.arange(Ho)[None, None, :, None, None]
    b2_a = jnp.arange(TB)[None, None, None, :, None]
    h_a = jnp.arange(H)[None, None, None, None, :]
    s1 = ((b_a == b2_a) & (h_a == ho_a * S + t_a - PAD)).astype(f32)
    s1 = s1.reshape(K * TB * Ho, TB * H)

    # Per-tap lane weight vectors for conv1, BN1 scale folded in.
    w1s = w1 * scale1[:, None]                                      # (CH, K)
    w1v = jnp.broadcast_to(w1s.T[:, :, None], (K, CH, W)).reshape(K, CH * W)

    # Block-diagonal conv2 matrix (CH*W, C2*Wo), BN2 scale folded in.
    ch_g = jnp.arange(CH)[:, None, None, None, None]
    w_g = jnp.arange(W)[None, :, None, None, None]
    oc_g = jnp.arange(C2)[None, None, :, None, None]
    wo_g = jnp.arange(Wo)[None, None, None, :, None]
    t_g = jnp.arange(K)[None, None, None, None, :]
    sel2 = ((ch_g == oc_g // EXP2) &
            (w_g == wo_g * S + t_g - PAD)).astype(f32)              # (CH,W,C2,Wo,K)
    w2s = w2 * scale2[:, None]                                      # (C2, K)
    m2 = (sel2 * w2s[None, None, :, None, :]).sum(-1).reshape(CH * W, C2 * Wo)

    # BN1 bias folded *through* conv2 (linear), plus BN2 bias -> one bias row.
    src_w = jnp.arange(Wo)[:, None] * S + jnp.arange(K)[None, :] - PAD
    valid = ((src_w >= 0) & (src_w < W)).astype(f32)                # (Wo, K)
    tapsum = jnp.einsum('ck,wk->cw', w2, valid)                     # (C2, Wo)
    ic2 = jnp.arange(C2) // EXP2
    total_bias = scale2[:, None] * bias1[ic2][:, None] * tapsum + bias2[:, None]
    biasv = total_bias.reshape(1, C2 * Wo)

    kernel = functools.partial(_dssc_kernel, rows=rows)

    def const_spec(shape):
        return pl.BlockSpec(shape, lambda n: (0, 0))

    out_flat = pl.pallas_call(
        kernel,
        out_shape=jax.ShapeDtypeStruct((NB, TB * Ho, C2 * Wo), x.dtype),
        grid_spec=pltpu.PrefetchScalarGridSpec(
            num_scalar_prefetch=0,
            grid=(NB,),
            in_specs=[
                pl.BlockSpec((1, TB * H, CH * W), lambda n: (n, 0, 0)),
                const_spec((K * TB * Ho, TB * H)),
                const_spec((K, CH * W)),
                const_spec((CH * W, C2 * Wo)),
                const_spec((1, C2 * Wo)),
            ],
            out_specs=pl.BlockSpec((1, TB * Ho, C2 * Wo), lambda n: (n, 0, 0)),
        ),
        compiler_params=pltpu.CompilerParams(
            dimension_semantics=("parallel",)),
    )(xe, s1, w1v, m2, biasv)

    # (NB, TB*Ho, C2*Wo) -> (N, C2, Ho, Wo)  (lane-dense kernel output, NCHW outside)
    out = out_flat.reshape(NB, TB, Ho, C2, Wo)
    return out.transpose(0, 1, 3, 2, 4).reshape(N, C2, Ho, Wo)


# ----- pure-JAX reference (for correctness check only) -------------------------
def reference(x, w1_full, g1, be1, rm1, rv1, w2_full, g2, be2, rm2, rv2):
    dn = ('NCHW', 'OIHW', 'NCHW')
    y = lax.conv_general_dilated(x, w1_full, window_strides=(S, 1),
                                 padding=((PAD, PAD), (0, 0)),
                                 dimension_numbers=dn, feature_group_count=C1)
    y = ((y - rm1[None, :, None, None])
         * (g1 / jnp.sqrt(rv1 + EPS))[None, :, None, None]
         + be1[None, :, None, None])
    y = lax.conv_general_dilated(y, w2_full, window_strides=(1, S),
                                 padding=((0, 0), (PAD, PAD)),
                                 dimension_numbers=dn, feature_group_count=CH)
    y = ((y - rm2[None, :, None, None])
         * (g2 / jnp.sqrt(rv2 + EPS))[None, :, None, None]
         + be2[None, :, None, None])
    return y


if __name__ == "__main__":
    key = jax.random.PRNGKey(0)
    ks = jax.random.split(key, 11)

    N, H, W = 2, 16, 16
    x = jax.random.normal(ks[0], (N, C1, H, W), jnp.float32)

    # Conv weights (PyTorch shapes: (CH,1,K,1) and (C2,1,1,K), bias=False).
    w1_full = jax.random.normal(ks[1], (CH, 1, K, 1), jnp.float32) * 0.5
    w2_full = jax.random.normal(ks[2], (C2, 1, 1, K), jnp.float32) * 0.5

    # BatchNorm parameters (deterministic, non-trivial), used in eval mode.
    g1 = jax.random.uniform(ks[3], (CH,), jnp.float32, 0.5, 1.5)
    be1 = jax.random.normal(ks[4], (CH,), jnp.float32) * 0.1
    rm1 = jax.random.normal(ks[5], (CH,), jnp.float32) * 0.1
    rv1 = jax.random.uniform(ks[6], (CH,), jnp.float32, 0.5, 1.5)
    g2 = jax.random.uniform(ks[7], (C2,), jnp.float32, 0.5, 1.5)
    be2 = jax.random.normal(ks[8], (C2,), jnp.float32) * 0.1
    rm2 = jax.random.normal(ks[9], (C2,), jnp.float32) * 0.1
    rv2 = jax.random.uniform(ks[10], (C2,), jnp.float32, 0.5, 1.5)

    # Fold BN (eval) into per-channel scale/bias.
    scale1 = g1 / jnp.sqrt(rv1 + EPS)
    bias1 = be1 - rm1 * scale1
    scale2 = g2 / jnp.sqrt(rv2 + EPS)
    bias2 = be2 - rm2 * scale2

    # 2-D views of the depthwise weights consumed by the kernel.
    w1 = w1_full[:, 0, :, 0]   # (CH, K)  -- taps along H
    w2 = w2_full[:, 0, 0, :]   # (C2, K)  -- taps along W

    out = depth_spatial_sep_conv(x, w1, scale1, bias1, w2, scale2, bias2)
    out = jax.block_until_ready(out)

    ref = reference(x, w1_full, g1, be1, rm1, rv1, w2_full, g2, be2, rm2, rv2)
    assert out.shape == (N, C2, 8, 8), out.shape
    max_err = float(jnp.max(jnp.abs(out - ref)))
    assert max_err < 1e-2, f"mismatch vs reference: max abs err {max_err}"

    print("KERNEL_OK")
</pallas_src>

<mosaic_0001>
module attributes {stable_mosaic.version = 11 : i64} {
  func.func @_dssc_kernel(%arg0: i32, %arg1: memref<1x32x128xf32, #tpu.memory_space<vmem>>, %arg2: memref<48x32xf32, #tpu.memory_space<vmem>>, %arg3: memref<3x128xf32, #tpu.memory_space<vmem>>, %arg4: memref<128x128xf32, #tpu.memory_space<vmem>>, %arg5: memref<1x128xf32, #tpu.memory_space<vmem>>, %arg6: memref<1x16x128xf32, #tpu.memory_space<vmem>>) attributes {dimension_semantics = [#tpu.dimension_semantics<parallel>], iteration_bounds = array<i64: 1>, scalar_prefetch = 0 : i64, scratch_operands = 0 : i64, tpu.core_type = #tpu.core_type<tc>, window_params = [{transform_indices = @transform_0, window_bounds = array<i64: 1, 32, 128>}, {pipeline_mode = #tpu.pipeline_mode<synchronous>, transform_indices = @transform_1, window_bounds = array<i64: 48, 32>}, {pipeline_mode = #tpu.pipeline_mode<synchronous>, transform_indices = @transform_2, window_bounds = array<i64: 3, 128>}, {pipeline_mode = #tpu.pipeline_mode<synchronous>, transform_indices = @transform_3, window_bounds = array<i64: 128, 128>}, {pipeline_mode = #tpu.pipeline_mode<synchronous>, transform_indices = @transform_4, window_bounds = array<i64: 1, 128>}, {transform_indices = @transform_5, window_bounds = array<i64: 1, 16, 128>}]} {
    %c0 = arith.constant 0 : index
    %c0_0 = arith.constant 0 : index
    %c0_1 = arith.constant 0 : index
    %0 = vector.load %arg1[%c0, %c0_0, %c0_1] : memref<1x32x128xf32, #tpu.memory_space<vmem>>, vector<1x32x128xf32>
    %1 = vector.shape_cast %0 : vector<1x32x128xf32> to vector<32x128xf32>
    %c0_2 = arith.constant 0 : index
    %c0_3 = arith.constant 0 : index
    %2 = vector.load %arg2[%c0_2, %c0_3] : memref<48x32xf32, #tpu.memory_space<vmem>>, vector<48x32xf32>
    %cst = arith.constant dense<0.000000e+00> : vector<48x128xf32>
    %3 = tpu.matmul %2, %1, %cst {dimension_numbers = #tpu.dot_dimension_numbers<[1], [0], [0], [1], [0, 0, 1, 1], [], []>} : vector<48x32xf32>, vector<32x128xf32>, vector<48x128xf32> -> vector<48x128xf32>
    %c0_4 = arith.constant 0 : index
    %c0_5 = arith.constant 0 : index
    %4 = vector.load %arg3[%c0_4, %c0_5] : memref<3x128xf32, #tpu.memory_space<vmem>>, vector<1x128xf32>
    %5 = vector.extract_strided_slice %3 {offsets = [0, 0], sizes = [16, 128], strides = [1, 1]} : vector<48x128xf32> to vector<16x128xf32>
    %6 = vector.broadcast %4 : vector<1x128xf32> to vector<16x128xf32>
    %7 = arith.mulf %6, %5 : vector<16x128xf32>
    %c1 = arith.constant 1 : index
    %c0_6 = arith.constant 0 : index
    %8 = vector.load %arg3[%c1, %c0_6] : memref<3x128xf32, #tpu.memory_space<vmem>>, vector<1x128xf32>
    %9 = vector.extract_strided_slice %3 {offsets = [16, 0], sizes = [16, 128], strides = [1, 1]} : vector<48x128xf32> to vector<16x128xf32>
    %10 = vector.broadcast %8 : vector<1x128xf32> to vector<16x128xf32>
    %11 = arith.mulf %10, %9 : vector<16x128xf32>
    %12 = arith.addf %7, %11 : vector<16x128xf32>
    %c2 = arith.constant 2 : index
    %c0_7 = arith.constant 0 : index
    %13 = vector.load %arg3[%c2, %c0_7] : memref<3x128xf32, #tpu.memory_space<vmem>>, vector<1x128xf32>
    %14 = vector.extract_strided_slice %3 {offsets = [32, 0], sizes = [16, 128], strides = [1, 1]} : vector<48x128xf32> to vector<16x128xf32>
    %15 = vector.broadcast %13 : vector<1x128xf32> to vector<16x128xf32>
    %16 = arith.mulf %15, %14 : vector<16x128xf32>
    %17 = arith.addf %12, %16 : vector<16x128xf32>
    %c0_8 = arith.constant 0 : index
    %c0_9 = arith.constant 0 : index
    %18 = vector.load %arg4[%c0_8, %c0_9] : memref<128x128xf32, #tpu.memory_space<vmem>>, vector<128x128xf32>
    %cst_10 = arith.constant dense<0.000000e+00> : vector<16x128xf32>
    %19 = tpu.matmul %17, %18, %cst_10 {dimension_numbers = #tpu.dot_dimension_numbers<[1], [0], [0], [1], [0, 0, 1, 1], [], []>} : vector<16x128xf32>, vector<128x128xf32>, vector<16x128xf32> -> vector<16x128xf32>
    %c0_11 = arith.constant 0 : index
    %c0_12 = arith.constant 0 : index
    %20 = vector.load %arg5[%c0_11, %c0_12] : memref<1x128xf32, #tpu.memory_space<vmem>>, vector<1x128xf32>
    %21 = vector.broadcast %20 : vector<1x128xf32> to vector<16x128xf32>
    %22 = arith.addf %19, %21 : vector<16x128xf32>
    %c0_13 = arith.constant 0 : index
    %c0_14 = arith.constant 0 : index
    %c0_15 = arith.constant 0 : index
    %23 = vector.load %arg6[%c0_13, %c0_14, %c0_15] : memref<1x16x128xf32, #tpu.memory_space<vmem>>, vector<1x16x128xf32>
    %24 = vector.shape_cast %23 : vector<1x16x128xf32> to vector<16x128xf32>
    %25 = vector.shape_cast %22 : vector<16x128xf32> to vector<1x16x128xf32>
    tpu.vector_store %arg6[%c0_13, %c0_14, %c0_15], %25 {strides = array<i32>} : memref<1x16x128xf32, #tpu.memory_space<vmem>>, vector<1x16x128xf32>,
    return
  }
  func.func @transform_0(%arg0: i32) -> (i32, i32, i32) {
    %c0_i32 = arith.constant 0 : i32
    %c0_i32_0 = arith.constant 0 : i32
    %c0_i32_1 = arith.constant 0 : i32
    return %arg0, %c0_i32, %c0_i32_0 : i32, i32, i32
  }
  func.func @transform_1(%arg0: i32) -> (i32, i32) {
    %c0_i32 = arith.constant 0 : i32
    %c0_i32_0 = arith.constant 0 : i32
    %c0_i32_1 = arith.constant 0 : i32
    return %c0_i32, %c0_i32_0 : i32, i32
  }
  func.func @transform_2(%arg0: i32) -> (i32, i32) {
    %c0_i32 = arith.constant 0 : i32
    %c0_i32_0 = arith.constant 0 : i32
    %c0_i32_1 = arith.constant 0 : i32
    return %c0_i32, %c0_i32_0 : i32, i32
  }
  func.func @transform_3(%arg0: i32) -> (i32, i32) {
    %c0_i32 = arith.constant 0 : i32
    %c0_i32_0 = arith.constant 0 : i32
    %c0_i32_1 = arith.constant 0 : i32
    return %c0_i32, %c0_i32_0 : i32, i32
  }
  func.func @transform_4(%arg0: i32) -> (i32, i32) {
    %c0_i32 = arith.constant 0 : i32
    %c0_i32_0 = arith.constant 0 : i32
    %c0_i32_1 = arith.constant 0 : i32
    return %c0_i32, %c0_i32_0 : i32, i32
  }
  func.func @transform_5(%arg0: i32) -> (i32, i32, i32) {
    %c0_i32 = arith.constant 0 : i32
    %c0_i32_0 = arith.constant 0 : i32
    %c0_i32_1 = arith.constant 0 : i32
    return %arg0, %c0_i32, %c0_i32_0 : i32, i32, i32
  }
}

</mosaic_0001>

<llo_original>
// kernel: mul.2
$region0: #{mul.2}
  #allocation0 [shape = 's32[1]{0}', space=sflag, size = 0x4, scoped, tag = 'scoped memory for mul.2']
  %s0 = inlined_call_operand.vmem [shape: f32[16], index: 0, kind: input, shape index: {}]
  %s1 = inlined_call_operand.vmem [shape: f32[16], index: 1, kind: input, shape index: {}]
  %s2 = inlined_call_operand.vmem [shape: f32[16], index: 2, kind: output, shape index: {}]
  %v3 = vld [vmem:[%s0] sm:$0x1]
  %v4 = vld [vmem:[%s1] sm:$0x1]
  %5 = xla_tuple %v3, %v4
  %6 = xla_tuple %5
  %v7 = vmul.f32 %v3, %v4
  %8 = xla_tuple %v7
  %9 = vst [vmem:[%s2] sm:$0x1] %v7

// kernel: depth_spatial_sep_conv.1
$region0: #{depth_spatial_sep_conv.1}
  #allocation0 [shape = 'u32[]', space=smem, size = 0x4, offset = 0x4, fixed_abs, tag = 'smem constant byte address 0x4 - core index']
  #allocation1 [shape = 'u32[144,128]{1,0:T(1,128)}', space=vmem, size = 0x12000, scoped, tag = 'internal scratch']
  %s0 = inlined_call_operand.vmem [shape: f32[1,32,128], index: 0, kind: input, shape index: {}]
  %s1 = inlined_call_operand.vmem [shape: f32[48,32], index: 1, kind: input, shape index: {}]
  %s2 = inlined_call_operand.vmem [shape: f32[3,128], index: 2, kind: input, shape index: {}]
  %s3 = inlined_call_operand.vmem [shape: f32[128,128], index: 3, kind: input, shape index: {}]
  %s4 = inlined_call_operand.vmem [shape: f32[1,128], index: 4, kind: input, shape index: {}]
  %s5 = inlined_call_operand.vmem [shape: f32[1,16,128], index: 5, kind: output, shape index: {}]
  %s6 = sld [smem:[#allocation0]]
  $region30: #{depth_spatial_sep_conv.1} parent=0
    _
  %s8 = ssub.s32 1, %s6
  %s9 = scalar_select 0, %s8, %s6
  // Predicated region
  $region2: #{depth_spatial_sep_conv.1} parent=0 // pred_check
    _
  $region3: #{depth_spatial_sep_conv.1} parent=0 // pred_check_branch
    %11 = sbr.rel (0) target = $region5
  $region4: #{depth_spatial_sep_conv.1} parent=0 // pred_region
    _
  $region5: #{depth_spatial_sep_conv.1} parent=0 // pred_fallthru
    _
  // Predicated region
  $region6: #{depth_spatial_sep_conv.1} parent=0 // pred_check
    _
  $region7: #{depth_spatial_sep_conv.1} parent=0 // pred_check_branch
    %13 = sbr.rel (0) target = $region9
  $region8: #{depth_spatial_sep_conv.1} parent=0 // pred_region
    _
  $region9: #{depth_spatial_sep_conv.1} parent=0 // pred_fallthru
    _
  // Predicated region
  $region10: #{depth_spatial_sep_conv.1} parent=0 // pred_check
    _
  $region11: #{depth_spatial_sep_conv.1} parent=0 // pred_check_branch
    %15 = sbr.rel (0) target = $region13
  $region12: #{depth_spatial_sep_conv.1} parent=0 // pred_region
    _
  $region13: #{depth_spatial_sep_conv.1} parent=0 // pred_fallthru
    _
  // Predicated region
  $region14: #{depth_spatial_sep_conv.1} parent=0 // pred_check
    _
  $region15: #{depth_spatial_sep_conv.1} parent=0 // pred_check_branch
    %17 = sbr.rel (0) target = $region17
  $region16: #{depth_spatial_sep_conv.1} parent=0 // pred_region
    _
  $region17: #{depth_spatial_sep_conv.1} parent=0 // pred_fallthru
    _
  // Predicated region
  $region18: #{depth_spatial_sep_conv.1} parent=0 // pred_check
    _
  $region19: #{depth_spatial_sep_conv.1} parent=0 // pred_check_branch
    %19 = sbr.rel (0) target = $region21
  $region20: #{depth_spatial_sep_conv.1} parent=0 // pred_region
    _
  $region21: #{depth_spatial_sep_conv.1} parent=0 // pred_fallthru
    _
  %v20 = vld [vmem:[%s0] sm:$0xff]
  %v21 = vld [vmem:[%s0 + $0x8] sm:$0xff]
  %v22 = vld [vmem:[%s0 + $0x10] sm:$0xff]
  %v23 = vld [vmem:[%s0 + $0x18] sm:$0xff]
  %v24 = vld [vmem:[%s1] sm:$0xff]
  %v25 = vld [vmem:[%s1 + $0x8] sm:$0xff]
  %v26 = vld [vmem:[%s1 + $0x10] sm:$0xff]
  %v27 = vld [vmem:[%s1 + $0x18] sm:$0xff]
  %v28 = vld [vmem:[%s1 + $0x20] sm:$0xff]
  %v29 = vld [vmem:[%s1 + $0x28] sm:$0xff]
  %vm30 = vcmask 261120
  %v32 = vsel %vm30, %v24, 0
  %v35 = vsel %vm30, %v25, 0
  %v38 = vsel %vm30, %v26, 0
  %v41 = vsel %vm30, %v27, 0
  %v44 = vsel %vm30, %v28, 0
  %v47 = vsel %vm30, %v29, 0
  %49 = vmatprep.subr.mxu0 0.0
  %50 = vmatpush1.msra.mxu0 %v20
  %51 = vmatprep.subr.mxu0 0.0
  %52 = vmatpush1.msra.mxu0 %v21
  %53 = vmatprep.subr.mxu0 0.0
  %54 = vmatpush1.msra.mxu0 %v22
  %55 = vmatprep.subr.mxu0 0.0
  %56 = vmatpush1.msra.mxu0 %v23
  %57 = vmatprep.subr.mxu0 0.0
  %58 = vmatpush1.msra.mxu0 0.0
  %59 = vmatprep.subr.mxu0 0.0
  %60 = vmatpush1.msra.mxu0 0.0
  %61 = vmatprep.subr.mxu0 0.0
  %62 = vmatpush1.msra.mxu0 0.0
  %63 = vmatprep.subr.mxu0 0.0
  %64 = vmatpush1.msra.mxu0 0.0
  %65 = vmatprep.subr.mxu0 0.0
  %66 = vmatpush1.msra.mxu0 0.0
  %67 = vmatprep.subr.mxu0 0.0
  %68 = vmatpush1.msra.mxu0 0.0
  %69 = vmatprep.subr.mxu0 0.0
  %70 = vmatpush1.msra.mxu0 0.0
  %71 = vmatprep.subr.mxu0 0.0
  %72 = vmatpush1.msra.mxu0 0.0
  %73 = vmatprep.subr.mxu0 0.0
  %74 = vmatpush1.msra.mxu0 0.0
  %75 = vmatprep.subr.mxu0 0.0
  %76 = vmatpush1.msra.mxu0 0.0
  %77 = vmatprep.subr.mxu0 0.0
  %78 = vmatpush1.msra.mxu0 0.0
  %79 = vmatprep.subr.mxu0 0.0
  %80 = vmatpush1.msra.mxu0 0.0
  %81 = vmatprep.subr.mxu0 0.0
  %82 = vmatpush1.msra.mxu0 0.0
  %83 = vmatprep.subr.mxu0 0.0
  %84 = vmatpush1.msra.mxu0 0.0
  %85 = vmatprep.subr.mxu0 0.0
  %86 = vmatpush1.msra.mxu0 0.0
  %87 = vmatprep.subr.mxu0 0.0
  %88 = vmatpush1.msra.mxu0 0.0
  %89 = vmatprep.subr.mxu0 0.0
  %90 = vmatpush1.msra.mxu0 0.0
  %91 = vmatprep.subr.mxu0 0.0
  %92 = vmatpush1.msra.mxu0 0.0
  %93 = vmatprep.subr.mxu0 0.0
  %94 = vmatpush1.msra.mxu0 0.0
  %95 = vmatprep.subr.mxu0 0.0
  %96 = vmatpush1.msra.mxu0 0.0
  %97 = vmatprep.subr.mxu0 0.0
  %98 = vmatpush1.msra.mxu0 0.0
  %99 = vmatprep.subr.mxu0 0.0
  %100 = vmatpush1.msra.mxu0 0.0
  %101 = vmatprep.subr.mxu0 0.0
  %102 = vmatpush1.msra.mxu0 0.0
  %103 = vmatprep.subr.mxu0 0.0
  %104 = vmatpush1.msra.mxu0 0.0
  %105 = vmatprep.subr.mxu0 0.0
  %106 = vmatpush1.msra.mxu0 0.0
  %107 = vmatprep.subr.mxu0 0.0
  %108 = vmatpush1.msra.mxu0 0.0
  %109 = vmatprep.subr.mxu0 0.0
  %110 = vmatpush1.msra.mxu0 0.0
  %111 = vmatprep.subr.mxu0 0.0
  %112 = vmatpush1.msra.mxu0 0.0
  %113 = vmatprep.mubr.f32.mxu0 0.0
  %114 = vmatmul.mubr.f32.gmra.mrb[0].mxu0 %v32
  %v115 = vpop.f32.mrb[0].mxu0
  %v116 = vadd.f32 0.0, %v115
  %v117 = vpop.f32.mrb[0].mxu0
  %118 = vmatprep.mubr.f32.mxu0 0.0
  %119 = vmatmul.mubr.f32.gmra.mrb[0].mxu0 %v35
  %v120 = vpop.f32.mrb[0].mxu0
  %v121 = vadd.f32 0.0, %v120
  %v122 = vpop.f32.mrb[0].mxu0
  %123 = vmatprep.mubr.f32.mxu0 0.0
  %124 = vmatmul.mubr.f32.gmra.mrb[0].mxu0 %v38
  %v125 = vpop.f32.mrb[0].mxu0
  %v126 = vadd.f32 0.0, %v125
  %v127 = vpop.f32.mrb[0].mxu0
  %128 = vmatprep.mubr.f32.mxu0 0.0
  %129 = vmatmul.mubr.f32.gmra.mrb[0].mxu0 %v41
  %v130 = vpop.f32.mrb[0].mxu0
  %v131 = vadd.f32 0.0, %v130
  %v132 = vpop.f32.mrb[0].mxu0
  %133 = vmatprep.mubr.f32.mxu0 0.0
  %134 = vmatmul.mubr.f32.gmra.mrb[0].mxu0 %v44
  %v135 = vpop.f32.mrb[0].mxu0
  %v136 = vadd.f32 0.0, %v135
  %v137 = vpop.f32.mrb[0].mxu0
  %138 = vmatprep.mubr.f32.mxu0 0.0
  %139 = vmatmul.mubr.f32.gmra.mrb[0].mxu0 %v47
  %v140 = vpop.f32.mrb[0].mxu0
  %v141 = vadd.f32 0.0, %v140
  %v142 = vpop.f32.mrb[0].mxu0
  %143 = vdwg.mxu0
  %v144 = vld [vmem:[%s2] sm:$0x1]
  %v145 = vlaneseq
  %v146 = vshrl.u32 %v145, 7
  %v147 = vsub.s32 0, %v146
  %v148 = vrot.slane %v144, %v147
  %v149 = vmul.f32 %v148, %v116
  %v150 = vmul.f32 %v148, %v121
  %v151 = vld [vmem:[%s2 + $0x1] sm:$0x1]
  %v152 = vlaneseq
  %v153 = vshrl.u32 %v152, 7
  %v154 = vsub.s32 0, %v153
  %v155 = vrot.slane %v151, %v154
  %v156 = vmul.f32 %v155, %v126
  %v157 = vmul.f32 %v155, %v131
  %v158 = vadd.f32 %v149, %v156
  %v159 = vadd.f32 %v150, %v157
  %v160 = vld [vmem:[%s2 + $0x2] sm:$0x1]
  %v161 = vlaneseq
  %v162 = vshrl.u32 %v161, 7
  %v163 = vsub.s32 0, %v162
  %v164 = vrot.slane %v160, %v163
  %v165 = vmul.f32 %v164, %v136
  %v166 = vmul.f32 %v164, %v141
  %v167 = vadd.f32 %v158, %v165
  %v168 = vadd.f32 %v159, %v166
  %v169 = vld [vmem:[%s3] sm:$0xff]
  %v170 = vld [vmem:[%s3 + $0x8] sm:$0xff]
  %v171 = vld [vmem:[%s3 + $0x10] sm:$0xff]
  %v172 = vld [vmem:[%s3 + $0x18] sm:$0xff]
  %v173 = vld [vmem:[%s3 + $0x20] sm:$0xff]
  %v174 = vld [vmem:[%s3 + $0x28] sm:$0xff]
  %v175 = vld [vmem:[%s3 + $0x30] sm:$0xff]
  %v176 = vld [vmem:[%s3 + $0x38] sm:$0xff]
  %v177 = vld [vmem:[%s3 + $0x40] sm:$0xff]
  %v178 = vld [vmem:[%s3 + $0x48] sm:$0xff]
  %v179 = vld [vmem:[%s3 + $0x50] sm:$0xff]
  %v180 = vld [vmem:[%s3 + $0x58] sm:$0xff]
  %v181 = vld [vmem:[%s3 + $0x60] sm:$0xff]
  %v182 = vld [vmem:[%s3 + $0x68] sm:$0xff]
  %v183 = vld [vmem:[%s3 + $0x70] sm:$0xff]
  %v184 = vld [vmem:[%s3 + $0x78] sm:$0xff]
  %v185 = vld [vmem:[%s4] sm:$0x1]
  %v187 = vlaneseq
  %v188 = vshrl.u32 %v187, 7
  %v189 = vsub.s32 0, %v188
  %v190 = vrot.slane %v185, %v189
  %192 = vmatprep.subr.mxu0 0.0
  %193 = vmatpush1.msra.mxu0 %v169
  %194 = vmatprep.subr.mxu0 0.0
  %195 = vmatpush1.msra.mxu0 %v170
  %196 = vmatprep.subr.mxu0 0.0
  %197 = vmatpush1.msra.mxu0 %v171
  %198 = vmatprep.subr.mxu0 0.0
  %199 = vmatpush1.msra.mxu0 %v172
  %200 = vmatprep.subr.mxu0 0.0
  %201 = vmatpush1.msra.mxu0 %v173
  %202 = vmatprep.subr.mxu0 0.0
  %203 = vmatpush1.msra.mxu0 %v174
  %204 = vmatprep.subr.mxu0 0.0
  %205 = vmatpush1.msra.mxu0 %v175
  %206 = vmatprep.subr.mxu0 0.0
  %207 = vmatpush1.msra.mxu0 %v176
  %208 = vmatprep.subr.mxu0 0.0
  %209 = vmatpush1.msra.mxu0 %v177
  %210 = vmatprep.subr.mxu0 0.0
  %211 = vmatpush1.msra.mxu0 %v178
  %212 = vmatprep.subr.mxu0 0.0
  %213 = vmatpush1.msra.mxu0 %v179
  %214 = vmatprep.subr.mxu0 0.0
  %215 = vmatpush1.msra.mxu0 %v180
  %216 = vmatprep.subr.mxu0 0.0
  %217 = vmatpush1.msra.mxu0 %v181
  %218 = vmatprep.subr.mxu0 0.0
  %219 = vmatpush1.msra.mxu0 %v182
  %220 = vmatprep.subr.mxu0 0.0
  %221 = vmatpush1.msra.mxu0 %v183
  %222 = vmatprep.subr.mxu0 0.0
  %223 = vmatpush1.msra.mxu0 %v184
  %224 = vmatprep.subr.mxu0 0.0
  %225 = vmatpush1.msra.mxu0 0.0
  %226 = vmatprep.subr.mxu0 0.0
  %227 = vmatpush1.msra.mxu0 0.0
  %228 = vmatprep.subr.mxu0 0.0
  %229 = vmatpush1.msra.mxu0 0.0
  %230 = vmatprep.subr.mxu0 0.0
  %231 = vmatpush1.msra.mxu0 0.0
  %232 = vmatprep.subr.mxu0 0.0
  %233 = vmatpush1.msra.mxu0 0.0
  %234 = vmatprep.subr.mxu0 0.0
  %235 = vmatpush1.msra.mxu0 0.0
  %236 = vmatprep.subr.mxu0 0.0
  %237 = vmatpush1.msra.mxu0 0.0
  %238 = vmatprep.subr.mxu0 0.0
  %239 = vmatpush1.msra.mxu0 0.0
  %240 = vmatprep.subr.mxu0 0.0
  %241 = vmatpush1.msra.mxu0 0.0
  %242 = vmatprep.subr.mxu0 0.0
  %243 = vmatpush1.msra.mxu0 0.0
  %244 = vmatprep.subr.mxu0 0.0
  %245 = vmatpush1.msra.mxu0 0.0
  %246 = vmatprep.subr.mxu0 0.0
  %247 = vmatpush1.msra.mxu0 0.0
  %248 = vmatprep.subr.mxu0 0.0
  %249 = vmatpush1.msra.mxu0 0.0
  %250 = vmatprep.subr.mxu0 0.0
  %251 = vmatpush1.msra.mxu0 0.0
  %252 = vmatprep.subr.mxu0 0.0
  %253 = vmatpush1.msra.mxu0 0.0
  %254 = vmatprep.subr.mxu0 0.0
  %255 = vmatpush1.msra.mxu0 0.0
  %256 = vmatprep.mubr.f32.mxu0 0.0
  %257 = vmatmul.mubr.f32.gmra.mrb[0].mxu0 %v167
  %v258 = vpop.f32.mrb[0].mxu0
  %v259 = vadd.f32 %v190, %v258
  %v260 = vpop.f32.mrb[0].mxu0
  %261 = vmatprep.mubr.f32.mxu0 0.0
  %262 = vmatmul.mubr.f32.gmra.mrb[0].mxu0 %v168
  %v263 = vpop.f32.mrb[0].mxu0
  %v264 = vadd.f32 %v190, %v263
  %v265 = vpop.f32.mrb[0].mxu0
  %266 = vdwg.mxu0
  %267 = vst [vmem:[%s5] sm:$0xff] %v259
  %268 = vst [vmem:[%s5 + $0x8] sm:$0xff] %v264
  // Predicated region
  $region22: #{depth_spatial_sep_conv.1} parent=0 // pred_check
    _
  $region23: #{depth_spatial_sep_conv.1} parent=0 // pred_check_branch
    %270 = sbr.rel (0) target = $region25
  $region24: #{depth_spatial_sep_conv.1} parent=0 // pred_region
    _
  $region25: #{depth_spatial_sep_conv.1} parent=0 // pred_fallthru
    _
  // Predicated region
  $region26: #{depth_spatial_sep_conv.1} parent=0 // pred_check
    _
  $region27: #{depth_spatial_sep_conv.1} parent=0 // pred_check_branch
    %272 = sbr.rel (0) target = $region29
  $region28: #{depth_spatial_sep_conv.1} parent=0 // pred_region
    _
  $region29: #{depth_spatial_sep_conv.1} parent=0 // pred_fallthru
    _

</llo_original>
